<compile_context>
chip_gen: v6e
topology: v6e:2x2x1
jax: 0.10.0
libtpu: 0.0.40
codegen_flags: <defaults>
</compile_context>

<pallas_src>
import jax
import jax.numpy as jnp
from jax import lax
from jax.experimental import pallas as pl
from jax.experimental.pallas import tpu as pltpu


def _round_up(n, m):
    return -(-n // m) * m


def gaze_mlp_kernel(x_ref, w1_ref, b1_ref, w2_ref, b2_ref, w3_ref, b3_ref, o_ref):
    """Fused MLP forward; batch-on-lanes after the first (transposed) matmul.

    x_ref  : (TB, in_dim)  natural-layout activation tile (batch on sublanes)
    wN_ref : torch nn.Linear layout (out, in)
    bN_ref : (out, 1) float32 -- broadcasts along the lane (batch) axis
    o_ref  : (3, TB) float32, lane-dense
    """
    x = x_ref[...]          # (TB, in_dim)
    w1 = w1_ref[...]        # (h1, in_dim)

    # Layer 1: W1 @ X^T via a transposed contraction (contract last dims of
    # both operands) -> (h1, TB).  Keeps the batch on the lane axis downstream
    # without a host-side transpose.
    h = lax.dot_general(w1, x, dimension_numbers=(((1,), (1,)), ((), ())),
                        preferred_element_type=jnp.float32)
    h = jnp.maximum(h + b1_ref[...], 0.0)

    # Layer 2: Linear(h1 -> h2) + ReLU  (cast back to weight dtype so bf16
    # inputs keep using bf16 MXU passes; accumulation stays f32).
    h = h.astype(w2_ref.dtype)
    h = jnp.dot(w2_ref[...], h, preferred_element_type=jnp.float32)
    h = jnp.maximum(h + b2_ref[...], 0.0)

    # Output layer: Linear(h2 -> 3), no activation.
    h = h.astype(w3_ref.dtype)
    out = jnp.dot(w3_ref[...], h, preferred_element_type=jnp.float32) + b3_ref[...]
    o_ref[...] = out.astype(o_ref.dtype)


def _vmem_bytes_estimate(tb, in_dim, h1, h2, out_dim, x_itemsize, w_itemsize):
    """Rough scoped-VMEM footprint for one grid step (with layout padding)."""
    lane, sub = 128, 8
    in_buf = 2 * tb * _round_up(in_dim, lane) * x_itemsize          # 2x input tile
    out_buf = 2 * _round_up(out_dim, sub) * tb * 4                  # 2x output tile
    inter = (_round_up(in_dim, sub) + 2 * _round_up(h1, sub)        # xT, h1, h2, out
             + 2 * _round_up(h2, sub) + _round_up(out_dim, sub)) * tb * 4
    weights = (h1 * _round_up(in_dim, lane) + h2 * _round_up(h1, lane)
               + _round_up(out_dim, sub) * _round_up(h2, lane)) * w_itemsize
    return in_buf + out_buf + inter + weights


def gaze_mlp_forward(x, params, *, tile_batch=8192, vmem_limit_bytes=None):
    """Runs the fused MLP. x: (batch, in_dim) in natural (PyTorch) layout.

    params: dict with w1 (h1,in), b1 (h1,), w2 (h2,h1), b2 (h2,),
            w3 (3,h2), b3 (3,)  -- torch.nn.Linear layout (out, in).
    Pass x and the weights as bfloat16 to halve HBM traffic (biases stay f32,
    accumulation stays f32); output is always float32.
    """
    batch, in_dim = x.shape
    w1, w2, w3 = params["w1"], params["w2"], params["w3"]
    h1, h2, out_dim = w1.shape[0], w2.shape[0], w3.shape[0]
    assert w1.shape[1] == in_dim

    # Tile selection: aim for ~tile_batch rows per tile, then derive the real
    # tile from the batch so the ragged final tile wastes < 128 rows.  Keep
    # the tile count even when > 1 so both v7x TensorCores get work.
    num_tiles = max(1, int(round(batch / tile_batch)))
    if num_tiles > 1 and num_tiles % 2 == 1:
        num_tiles += 1
    tb = _round_up(pl.cdiv(batch, num_tiles), 128)
    num_tiles = pl.cdiv(batch, tb)

    # Biases as (out, 1) f32 so they lane-broadcast inside the kernel.
    b1 = params["b1"].reshape(-1, 1).astype(jnp.float32)
    b2 = params["b2"].reshape(-1, 1).astype(jnp.float32)
    b3 = params["b3"].reshape(-1, 1).astype(jnp.float32)

    if vmem_limit_bytes is None:
        est = _vmem_bytes_estimate(tb, in_dim, h1, h2, out_dim,
                                   jnp.dtype(x.dtype).itemsize,
                                   jnp.dtype(w1.dtype).itemsize)
        # Headroom, floor at the smallest per-chip scoped default (16 MiB on
        # v5e), cap under v7x's 64 MiB physical VMEM.
        vmem_limit_bytes = int(min(max(est * 3 // 2, 16 * 1024 * 1024),
                                   60 * 1024 * 1024))

    # Explicit per-operand specs.  Weights/biases use constant index_maps ->
    # fetched once, resident in VMEM across grid steps.
    in_specs = [
        pl.BlockSpec((tb, in_dim), lambda i: (i, 0)),      # x: tiled over batch rows
        pl.BlockSpec((h1, in_dim), lambda i: (0, 0)),      # w1
        pl.BlockSpec((h1, 1), lambda i: (0, 0)),           # b1
        pl.BlockSpec((h2, h1), lambda i: (0, 0)),          # w2
        pl.BlockSpec((h2, 1), lambda i: (0, 0)),           # b2
        pl.BlockSpec((out_dim, h2), lambda i: (0, 0)),     # w3
        pl.BlockSpec((out_dim, 1), lambda i: (0, 0)),      # b3
    ]
    out_spec = pl.BlockSpec((out_dim, tb), lambda i: (0, i))

    outT = pl.pallas_call(
        gaze_mlp_kernel,
        out_shape=jax.ShapeDtypeStruct((out_dim, batch), jnp.float32),
        grid=(num_tiles,),
        in_specs=in_specs,
        out_specs=out_spec,
        compiler_params=pltpu.CompilerParams(
            dimension_semantics=("parallel",),
            vmem_limit_bytes=vmem_limit_bytes),
    )(x, w1, b1, w2, b2, w3, b3)

    # Back to the PyTorch-facing (batch, 3) layout (tiny 3 x batch transpose).
    return outT.T


def init_params(key, window_size=3, hidden_sizes=(32, 32)):
    """Deterministic init matching the nn.Linear shapes of GazeMLP."""
    in_dim = 9 * window_size
    dims = [in_dim] + list(hidden_sizes) + [3]
    params = {}
    keys = jax.random.split(key, 2 * (len(dims) - 1))
    for i in range(len(dims) - 1):
        fan_in, fan_out = dims[i], dims[i + 1]
        bound = 1.0 / (fan_in ** 0.5)
        # torch.nn.Linear layout: weight (out, in), bias (out,)
        params[f"w{i + 1}"] = jax.random.uniform(
            keys[2 * i], (fan_out, fan_in), jnp.float32, -bound, bound)
        params[f"b{i + 1}"] = jax.random.uniform(
            keys[2 * i + 1], (fan_out,), jnp.float32, -bound, bound)
    return params


def reference_forward(x, params):
    """Plain-JAX reference mirroring the PyTorch forward (all f32)."""
    h = x @ params["w1"].T + params["b1"]
    h = jnp.maximum(h, 0.0)
    h = h @ params["w2"].T + params["b2"]
    h = jnp.maximum(h, 0.0)
    return h @ params["w3"].T + params["b3"]


if __name__ == "__main__":
    key = jax.random.PRNGKey(0)
    k_x, k_p = jax.random.split(key)

    window_size = 3
    hidden_sizes = (32, 32)
    in_dim = 9 * window_size  # 27
    params = init_params(k_p, window_size=window_size, hidden_sizes=hidden_sizes)

    # --- small demo batch (single 128-lane tile, f32, tight tolerance) ------
    batch = 8
    x = jax.random.normal(k_x, (batch, in_dim), jnp.float32)
    out = jax.block_until_ready(gaze_mlp_forward(x, params))
    ref = reference_forward(x, params)
    assert out.shape == (batch, 3), out.shape
    assert jnp.allclose(out, ref, atol=1e-5, rtol=1e-5), (
        f"max abs err = {jnp.max(jnp.abs(out - ref))}")

    # --- multi-tile batch, ragged edge handled by Pallas masking (no pad) ---
    big_batch = 1050   # with tile_batch=512 -> 2 tiles of 640, last tile ragged
    xb = jax.random.normal(k_x, (big_batch, in_dim), jnp.float32)
    out_b = jax.block_until_ready(gaze_mlp_forward(xb, params, tile_batch=512))
    ref_b = reference_forward(xb, params)
    assert out_b.shape == (big_batch, 3), out_b.shape
    assert jnp.allclose(out_b, ref_b, atol=1e-5, rtol=1e-5), (
        f"max abs err = {jnp.max(jnp.abs(out_b - ref_b))}")

    # --- bf16 activations/weights (halved HBM stream, f32 accumulation) -----
    bf_batch = 2048
    xc = jax.random.normal(k_x, (bf_batch, in_dim), jnp.float32)
    params_bf = {k: (v.astype(jnp.bfloat16) if k.startswith("w") else v)
                 for k, v in params.items()}
    out_c = jax.block_until_ready(
        gaze_mlp_forward(xc.astype(jnp.bfloat16), params_bf, tile_batch=1024))
    params_bf_as_f32 = {k: v.astype(jnp.float32) for k, v in params_bf.items()}
    ref_c = reference_forward(xc.astype(jnp.bfloat16).astype(jnp.float32),
                              params_bf_as_f32)
    assert out_c.shape == (bf_batch, 3), out_c.shape
    assert jnp.allclose(out_c, ref_c, atol=5e-2, rtol=5e-2), (
        f"max abs err = {jnp.max(jnp.abs(out_c - ref_c))}")

    print("KERNEL_OK")
</pallas_src>

<mosaic_0001>
module attributes {stable_mosaic.version = 11 : i64} {
  func.func @gaze_mlp_kernel(%arg0: i32, %arg1: memref<128x27xf32, #tpu.memory_space<vmem>>, %arg2: memref<32x27xf32, #tpu.memory_space<vmem>>, %arg3: memref<32x1xf32, #tpu.memory_space<vmem>>, %arg4: memref<32x32xf32, #tpu.memory_space<vmem>>, %arg5: memref<32x1xf32, #tpu.memory_space<vmem>>, %arg6: memref<3x32xf32, #tpu.memory_space<vmem>>, %arg7: memref<3x1xf32, #tpu.memory_space<vmem>>, %arg8: memref<3x128xf32, #tpu.memory_space<vmem>>) attributes {dimension_semantics = [#tpu.dimension_semantics<parallel>], iteration_bounds = array<i64: 1>, scalar_prefetch = 0 : i64, scratch_operands = 0 : i64, tpu.core_type = #tpu.core_type<tc>, window_params = [{transform_indices = @transform_0, window_bounds = array<i64: 128, 27>}, {pipeline_mode = #tpu.pipeline_mode<synchronous>, transform_indices = @transform_1, window_bounds = array<i64: 32, 27>}, {pipeline_mode = #tpu.pipeline_mode<synchronous>, transform_indices = @transform_2, window_bounds = array<i64: 32, 1>}, {pipeline_mode = #tpu.pipeline_mode<synchronous>, transform_indices = @transform_3, window_bounds = array<i64: 32, 32>}, {pipeline_mode = #tpu.pipeline_mode<synchronous>, transform_indices = @transform_4, window_bounds = array<i64: 32, 1>}, {pipeline_mode = #tpu.pipeline_mode<synchronous>, transform_indices = @transform_5, window_bounds = array<i64: 3, 32>}, {pipeline_mode = #tpu.pipeline_mode<synchronous>, transform_indices = @transform_6, window_bounds = array<i64: 3, 1>}, {transform_indices = @transform_7, window_bounds = array<i64: 3, 128>}]} {
    %c0 = arith.constant 0 : index
    %c0_0 = arith.constant 0 : index
    %0 = vector.load %arg1[%c0, %c0_0] : memref<128x27xf32, #tpu.memory_space<vmem>>, vector<128x27xf32>
    %c0_1 = arith.constant 0 : index
    %c0_2 = arith.constant 0 : index
    %1 = vector.load %arg2[%c0_1, %c0_2] : memref<32x27xf32, #tpu.memory_space<vmem>>, vector<32x27xf32>
    %cst = arith.constant dense<0.000000e+00> : vector<32x128xf32>
    %2 = tpu.matmul %1, %0, %cst {dimension_numbers = #tpu.dot_dimension_numbers<[1], [1], [0], [0], [0, 0, 1, 0], [], []>} : vector<32x27xf32>, vector<128x27xf32>, vector<32x128xf32> -> vector<32x128xf32>
    %c0_3 = arith.constant 0 : index
    %c0_4 = arith.constant 0 : index
    %3 = vector.load %arg3[%c0_3, %c0_4] : memref<32x1xf32, #tpu.memory_space<vmem>>, vector<32x1xf32>
    %4 = vector.broadcast %3 : vector<32x1xf32> to vector<32x128xf32>
    %5 = arith.addf %2, %4 : vector<32x128xf32>
    %cst_5 = arith.constant 0.000000e+00 : f32
    %6 = vector.broadcast %cst_5 : f32 to vector<32x128xf32>
    %7 = arith.maximumf %5, %6 : vector<32x128xf32>
    %c0_6 = arith.constant 0 : index
    %c0_7 = arith.constant 0 : index
    %8 = vector.load %arg4[%c0_6, %c0_7] : memref<32x32xf32, #tpu.memory_space<vmem>>, vector<32x32xf32>
    %cst_8 = arith.constant dense<0.000000e+00> : vector<32x128xf32>
    %9 = tpu.matmul %8, %7, %cst_8 {dimension_numbers = #tpu.dot_dimension_numbers<[1], [0], [0], [1], [0, 0, 1, 1], [], []>} : vector<32x32xf32>, vector<32x128xf32>, vector<32x128xf32> -> vector<32x128xf32>
    %c0_9 = arith.constant 0 : index
    %c0_10 = arith.constant 0 : index
    %10 = vector.load %arg5[%c0_9, %c0_10] : memref<32x1xf32, #tpu.memory_space<vmem>>, vector<32x1xf32>
    %11 = vector.broadcast %10 : vector<32x1xf32> to vector<32x128xf32>
    %12 = arith.addf %9, %11 : vector<32x128xf32>
    %cst_11 = arith.constant 0.000000e+00 : f32
    %13 = vector.broadcast %cst_11 : f32 to vector<32x128xf32>
    %14 = arith.maximumf %12, %13 : vector<32x128xf32>
    %c0_12 = arith.constant 0 : index
    %c0_13 = arith.constant 0 : index
    %15 = vector.load %arg6[%c0_12, %c0_13] : memref<3x32xf32, #tpu.memory_space<vmem>>, vector<3x32xf32>
    %cst_14 = arith.constant dense<0.000000e+00> : vector<3x128xf32>
    %16 = tpu.matmul %15, %14, %cst_14 {dimension_numbers = #tpu.dot_dimension_numbers<[1], [0], [0], [1], [0, 0, 1, 1], [], []>} : vector<3x32xf32>, vector<32x128xf32>, vector<3x128xf32> -> vector<3x128xf32>
    %c0_15 = arith.constant 0 : index
    %c0_16 = arith.constant 0 : index
    %17 = vector.load %arg7[%c0_15, %c0_16] : memref<3x1xf32, #tpu.memory_space<vmem>>, vector<3x1xf32>
    %18 = vector.broadcast %17 : vector<3x1xf32> to vector<3x128xf32>
    %19 = arith.addf %16, %18 : vector<3x128xf32>
    %c0_17 = arith.constant 0 : index
    %c0_18 = arith.constant 0 : index
    %20 = vector.load %arg8[%c0_17, %c0_18] : memref<3x128xf32, #tpu.memory_space<vmem>>, vector<3x128xf32>
    tpu.vector_store %arg8[%c0_17, %c0_18], %19 {strides = array<i32>} : memref<3x128xf32, #tpu.memory_space<vmem>>, vector<3x128xf32>,
    return
  }
  func.func @transform_0(%arg0: i32) -> (i32, i32) {
    %c0_i32 = arith.constant 0 : i32
    %c0_i32_0 = arith.constant 0 : i32
    return %arg0, %c0_i32 : i32, i32
  }
  func.func @transform_1(%arg0: i32) -> (i32, i32) {
    %c0_i32 = arith.constant 0 : i32
    %c0_i32_0 = arith.constant 0 : i32
    %c0_i32_1 = arith.constant 0 : i32
    return %c0_i32, %c0_i32_0 : i32, i32
  }
  func.func @transform_2(%arg0: i32) -> (i32, i32) {
    %c0_i32 = arith.constant 0 : i32
    %c0_i32_0 = arith.constant 0 : i32
    %c0_i32_1 = arith.constant 0 : i32
    return %c0_i32, %c0_i32_0 : i32, i32
  }
  func.func @transform_3(%arg0: i32) -> (i32, i32) {
    %c0_i32 = arith.constant 0 : i32
    %c0_i32_0 = arith.constant 0 : i32
    %c0_i32_1 = arith.constant 0 : i32
    return %c0_i32, %c0_i32_0 : i32, i32
  }
  func.func @transform_4(%arg0: i32) -> (i32, i32) {
    %c0_i32 = arith.constant 0 : i32
    %c0_i32_0 = arith.constant 0 : i32
    %c0_i32_1 = arith.constant 0 : i32
    return %c0_i32, %c0_i32_0 : i32, i32
  }
  func.func @transform_5(%arg0: i32) -> (i32, i32) {
    %c0_i32 = arith.constant 0 : i32
    %c0_i32_0 = arith.constant 0 : i32
    %c0_i32_1 = arith.constant 0 : i32
    return %c0_i32, %c0_i32_0 : i32, i32
  }
  func.func @transform_6(%arg0: i32) -> (i32, i32) {
    %c0_i32 = arith.constant 0 : i32
    %c0_i32_0 = arith.constant 0 : i32
    %c0_i32_1 = arith.constant 0 : i32
    return %c0_i32, %c0_i32_0 : i32, i32
  }
  func.func @transform_7(%arg0: i32) -> (i32, i32) {
    %c0_i32 = arith.constant 0 : i32
    %c0_i32_0 = arith.constant 0 : i32
    return %c0_i32, %arg0 : i32, i32
  }
}

</mosaic_0001>

<llo_original>
// kernel: tpu_custom_call.1
$region0: #{tpu_custom_call.1}
  #allocation0 [shape = 'u32[]', space=smem, size = 0x4, offset = 0x4, fixed_abs, tag = 'smem constant byte address 0x4 - core index']
  #allocation1 [shape = 'u32[144,128]{1,0:T(1,128)}', space=vmem, size = 0x12000, scoped, tag = 'internal scratch']
  %s0 = inlined_call_operand.hbm [shape: f32[8,27], index: 0, kind: input, shape index: {}]
  %s1 = inlined_call_operand.vmem [shape: f32[32,27], index: 1, kind: input, shape index: {}]
  %s2 = inlined_call_operand.vmem [shape: f32[32,1], index: 2, kind: input, shape index: {}]
  %s3 = inlined_call_operand.vmem [shape: f32[32,32], index: 3, kind: input, shape index: {}]
  %s4 = inlined_call_operand.vmem [shape: f32[32,1], index: 4, kind: input, shape index: {}]
  %s5 = inlined_call_operand.vmem [shape: f32[3,32], index: 5, kind: input, shape index: {}]
  %s6 = inlined_call_operand.vmem [shape: f32[3,1], index: 6, kind: input, shape index: {}]
  %s7 = inlined_call_operand.hbm [shape: f32[3,8], index: 7, kind: output, shape index: {}]
  %s8 = sld [smem:[#allocation0]]
  $region42: #{tpu_custom_call.1} parent=0
    _
  %s10 = ssub.s32 1, %s8
  %s11 = scalar_select 0, %s10, %s8
  $region1: #{tpu_custom_call.1} parent=0
    #allocation2 [shape = 'u8[65536]{0}', space=vmem, size = 0x10000, scoped, tag = 'input window, operand 0, single buffered']
    #allocation3 [shape = 's32[1]{0}', space=sflag, size = 0x4, scoped, tag = 'scoped memory for tpu_custom_call.1']
    #allocation4 [shape = 's32[1]{0}', space=sflag, size = 0x4, scoped, tag = 'scoped memory for tpu_custom_call.1']
    #allocation5 [shape = 'u8[2048]{0}', space=vmem, size = 0x800, scoped, tag = 'output window, operand 0, single buffered']
    %12 = vsyncpa [#allocation3], 0
    %13 = vsyncpa [#allocation4], 0
    // Predicated region
    $region2: #{tpu_custom_call.1} parent=1 // pred_check
      _
    $region3: #{tpu_custom_call.1} parent=1 // pred_check_branch
      %15 = sbr.rel (0) target = $region5
    $region4: #{tpu_custom_call.1} parent=1 // pred_region
      %s17 = ssub.s32 2048, 128
      %18 = vsyncadd [#allocation3], %s17
      %s19 = sshll.u32 [#allocation2], 4
      %s20 = int_to_ptr.vmem [resolvable:$true] %s19
      %25 = dma.hbm_to_vmem [thread:$0]  %s0, 128, %s20, [#allocation3], 128, 128, 8
    $region5: #{tpu_custom_call.1} parent=1 // pred_fallthru
      _
    // Predicated region
    $region6: #{tpu_custom_call.1} parent=1 // pred_check
      _
    $region7: #{tpu_custom_call.1} parent=1 // pred_check_branch
      %27 = sbr.rel (0) target = $region9
    $region8: #{tpu_custom_call.1} parent=1 // pred_region
      _
    $region9: #{tpu_custom_call.1} parent=1 // pred_fallthru
      _
    // Predicated region
    $region10: #{tpu_custom_call.1} parent=1 // pred_check
      _
    $region11: #{tpu_custom_call.1} parent=1 // pred_check_branch
      %29 = sbr.rel (0) target = $region13
    $region12: #{tpu_custom_call.1} parent=1 // pred_region
      _
    $region13: #{tpu_custom_call.1} parent=1 // pred_fallthru
      _
    // Predicated region
    $region14: #{tpu_custom_call.1} parent=1 // pred_check
      _
    $region15: #{tpu_custom_call.1} parent=1 // pred_check_branch
      %31 = sbr.rel (0) target = $region17
    $region16: #{tpu_custom_call.1} parent=1 // pred_region
      _
    $region17: #{tpu_custom_call.1} parent=1 // pred_fallthru
      _
    // Predicated region
    $region18: #{tpu_custom_call.1} parent=1 // pred_check
      _
    $region19: #{tpu_custom_call.1} parent=1 // pred_check_branch
      %33 = sbr.rel (0) target = $region21
    $region20: #{tpu_custom_call.1} parent=1 // pred_region
      _
    $region21: #{tpu_custom_call.1} parent=1 // pred_fallthru
      _
    // Predicated region
    $region22: #{tpu_custom_call.1} parent=1 // pred_check
      _
    $region23: #{tpu_custom_call.1} parent=1 // pred_check_branch
      %35 = sbr.rel (0) target = $region25
    $region24: #{tpu_custom_call.1} parent=1 // pred_region
      _
    $region25: #{tpu_custom_call.1} parent=1 // pred_fallthru
      _
    // Predicated region
    $region26: #{tpu_custom_call.1} parent=1 // pred_check
      _
    $region27: #{tpu_custom_call.1} parent=1 // pred_check_branch
      %37 = sbr.rel (0) target = $region29
    $region28: #{tpu_custom_call.1} parent=1 // pred_region
      _
    $region29: #{tpu_custom_call.1} parent=1 // pred_fallthru
      _
    // Predicated region
    $region30: #{tpu_custom_call.1} parent=1 // pred_check
      _
    $region31: #{tpu_custom_call.1} parent=1 // pred_check_branch
      %39 = sbr.rel (0) target = $region33
    $region32: #{tpu_custom_call.1} parent=1 // pred_region
      %40 = dma.done [#allocation3], 2048
    $region33: #{tpu_custom_call.1} parent=1 // pred_fallthru
      _
    %v41 = vld [vmem:[#allocation2] sm:$0xff]
    %v42 = vld [vmem:[#allocation2 + $0x8] sm:$0xff]
    %v43 = vld [vmem:[#allocation2 + $0x10] sm:$0xff]
    %v44 = vld [vmem:[#allocation2 + $0x18] sm:$0xff]
    %v45 = vld [vmem:[#allocation2 + $0x20] sm:$0xff]
    %v46 = vld [vmem:[#allocation2 + $0x28] sm:$0xff]
    %v47 = vld [vmem:[#allocation2 + $0x30] sm:$0xff]
    %v48 = vld [vmem:[#allocation2 + $0x38] sm:$0xff]
    %v49 = vld [vmem:[#allocation2 + $0x40] sm:$0xff]
    %v50 = vld [vmem:[#allocation2 + $0x48] sm:$0xff]
    %v51 = vld [vmem:[#allocation2 + $0x50] sm:$0xff]
    %v52 = vld [vmem:[#allocation2 + $0x58] sm:$0xff]
    %v53 = vld [vmem:[#allocation2 + $0x60] sm:$0xff]
    %v54 = vld [vmem:[#allocation2 + $0x68] sm:$0xff]
    %v55 = vld [vmem:[#allocation2 + $0x70] sm:$0xff]
    %v56 = vld [vmem:[#allocation2 + $0x78] sm:$0xff]
    %v57 = vld [vmem:[%s1] sm:$0xff]
    %v58 = vld [vmem:[%s1 + $0x8] sm:$0xff]
    %v59 = vld [vmem:[%s1 + $0x10] sm:$0xff]
    %v60 = vld [vmem:[%s1 + $0x18] sm:$0xff]
    %v61 = vld [vmem:[%s2] sm:$0xff]
    %v62 = vld [vmem:[%s2 + $0x8] sm:$0xff]
    %v63 = vld [vmem:[%s2 + $0x10] sm:$0xff]
    %v64 = vld [vmem:[%s2 + $0x18] sm:$0xff]
    %66 = vset.pattern.permute.xlu0 0
    %67 = vperm.xlu0 %66, %v61
    %v68 = vpop.permute.xlu0 %67
    %71 = vset.pattern.permute.xlu0 0
    %72 = vperm.xlu0 %71, %v62
    %v73 = vpop.permute.xlu0 %72
    %76 = vset.pattern.permute.xlu0 0
    %77 = vperm.xlu0 %76, %v63
    %v78 = vpop.permute.xlu0 %77
    %81 = vset.pattern.permute.xlu0 0
    %82 = vperm.xlu0 %81, %v64
    %v83 = vpop.permute.xlu0 %82
    %vm85 = vcmask 220160
    %v87 = vsel %vm85, %v57, 0
    %v90 = vsel %vm85, %v58, 0
    %v93 = vsel %vm85, %v59, 0
    %v96 = vsel %vm85, %v60, 0
    %v99 = vsel %vm85, %v41, 0
    %v102 = vsel %vm85, %v42, 0
    %v105 = vsel %vm85, %v43, 0
    %v108 = vsel %vm85, %v44, 0
    %v111 = vsel %vm85, %v45, 0
    %v114 = vsel %vm85, %v46, 0
    %v117 = vsel %vm85, %v47, 0
    %v120 = vsel %vm85, %v48, 0
    %v123 = vsel %vm85, %v49, 0
    %v126 = vsel %vm85, %v50, 0
    %v129 = vsel %vm85, %v51, 0
    %v132 = vsel %vm85, %v52, 0
    %v135 = vsel %vm85, %v53, 0
    %v138 = vsel %vm85, %v54, 0
    %v141 = vsel %vm85, %v55, 0
    %v144 = vsel %vm85, %v56, 0
    %146 = vmatprep.subr.mxu0 0.0
    %147 = vmatpush1.xpose.msra.mxu0 %v144
    %148 = vmatprep.subr.mxu0 0.0
    %149 = vmatpush1.xpose.msra.mxu0 %v141
    %150 = vmatprep.subr.mxu0 0.0
    %151 = vmatpush1.xpose.msra.mxu0 %v138
    %152 = vmatprep.subr.mxu0 0.0
    %153 = vmatpush1.xpose.msra.mxu0 %v135
    %154 = vmatprep.subr.mxu0 0.0
    %155 = vmatpush1.xpose.msra.mxu0 %v132
    %156 = vmatprep.subr.mxu0 0.0
    %157 = vmatpush1.xpose.msra.mxu0 %v129
    %158 = vmatprep.subr.mxu0 0.0
    %159 = vmatpush1.xpose.msra.mxu0 %v126
    %160 = vmatprep.subr.mxu0 0.0
    %161 = vmatpush1.xpose.msra.mxu0 %v123
    %162 = vmatprep.subr.mxu0 0.0
    %163 = vmatpush1.xpose.msra.mxu0 %v120
    %164 = vmatprep.subr.mxu0 0.0
    %165 = vmatpush1.xpose.msra.mxu0 %v117
    %166 = vmatprep.subr.mxu0 0.0
    %167 = vmatpush1.xpose.msra.mxu0 %v114
    %168 = vmatprep.subr.mxu0 0.0
    %169 = vmatpush1.xpose.msra.mxu0 %v111
    %170 = vmatprep.subr.mxu0 0.0
    %171 = vmatpush1.xpose.msra.mxu0 %v108
    %172 = vmatprep.subr.mxu0 0.0
    %173 = vmatpush1.xpose.msra.mxu0 %v105
    %174 = vmatprep.subr.mxu0 0.0
    %175 = vmatpush1.xpose.msra.mxu0 %v102
    %176 = vmatprep.subr.mxu0 0.0
    %177 = vmatpush1.xpose.msra.mxu0 %v99
    %178 = vmatprep.subr.mxu0 0.0
    %179 = vmatpush2.xpose.msra.mxu0 0.0
    %180 = vmatprep.subr.mxu0 0.0
    %181 = vmatpush2.xpose.msra.mxu0 0.0
    %182 = vmatprep.subr.mxu0 0.0
    %183 = vmatpush2.xpose.msra.mxu0 0.0
    %184 = vmatprep.subr.mxu0 0.0
    %185 = vmatpush2.xpose.msra.mxu0 0.0
    %186 = vmatprep.subr.mxu0 0.0
    %187 = vmatpush2.xpose.msra.mxu0 0.0
    %188 = vmatprep.subr.mxu0 0.0
    %189 = vmatpush2.xpose.msra.mxu0 0.0
    %190 = vmatprep.subr.mxu0 0.0
    %191 = vmatpush2.xpose.msra.mxu0 0.0
    %192 = vmatprep.subr.mxu0 0.0
    %193 = vmatpush2.xpose.msra.mxu0 0.0
    %194 = vmatprep.subr.mxu0 0.0
    %195 = vmatpush2.xpose.msra.mxu0 0.0
    %196 = vmatprep.subr.mxu0 0.0
    %197 = vmatpush2.xpose.msra.mxu0 0.0
    %198 = vmatprep.subr.mxu0 0.0
    %199 = vmatpush2.xpose.msra.mxu0 0.0
    %200 = vmatprep.subr.mxu0 0.0
    %201 = vmatpush2.xpose.msra.mxu0 0.0
    %202 = vmatprep.subr.mxu0 0.0
    %203 = vmatpush2.xpose.msra.mxu0 0.0
    %204 = vmatprep.subr.mxu0 0.0
    %205 = vmatpush2.xpose.msra.mxu0 0.0
    %206 = vmatprep.subr.mxu0 0.0
    %207 = vmatpush2.xpose.msra.mxu0 0.0
    %208 = vmatprep.subr.mxu0 0.0
    %209 = vmatpush2.xpose.msra.mxu0 0.0
    %210 = vmatprep.mubr.f32.mxu0 0.0
    %211 = vmatmul.mubr.f32.gmra.mxu0 %v87
    %v212 = vpop.f32.mrf.mxu0
    %v213 = vadd.f32 %v68, %v212
    %v214 = vpop.f32.mrf.mxu0
    %215 = vmatprep.mubr.f32.mxu0 0.0
    %216 = vmatmul.mubr.f32.gmra.mxu0 %v90
    %v217 = vpop.f32.mrf.mxu0
    %v218 = vadd.f32 %v73, %v217
    %v219 = vpop.f32.mrf.mxu0
    %220 = vmatprep.mubr.f32.mxu0 0.0
    %221 = vmatmul.mubr.f32.gmra.mxu0 %v93
    %v222 = vpop.f32.mrf.mxu0
    %v223 = vadd.f32 %v78, %v222
    %v224 = vpop.f32.mrf.mxu0
    %225 = vmatprep.mubr.f32.mxu0 0.0
    %226 = vmatmul.mubr.f32.gmra.mxu0 %v96
    %v227 = vpop.f32.mrf.mxu0
    %v228 = vadd.f32 %v83, %v227
    %v229 = vpop.f32.mrf.mxu0
    %230 = vdwg.mxu0
    %v231 = vmax.f32 %v213, 0.0
    %v232 = vmax.f32 %v218, 0.0
    %v233 = vmax.f32 %v223, 0.0
    %v234 = vmax.f32 %v228, 0.0
    %v235 = vld [vmem:[%s3] sm:$0xff]
    %v236 = vld [vmem:[%s3 + $0x8] sm:$0xff]
    %v237 = vld [vmem:[%s3 + $0x10] sm:$0xff]
    %v238 = vld [vmem:[%s3 + $0x18] sm:$0xff]
    %v239 = vld [vmem:[%s4] sm:$0xff]
    %v240 = vld [vmem:[%s4 + $0x8] sm:$0xff]
    %v241 = vld [vmem:[%s4 + $0x10] sm:$0xff]
    %v242 = vld [vmem:[%s4 + $0x18] sm:$0xff]
    %244 = vset.pattern.permute.xlu0 0
    %245 = vperm.xlu0 %244, %v239
    %v246 = vpop.permute.xlu0 %245
    %249 = vset.pattern.permute.xlu0 0
    %250 = vperm.xlu0 %249, %v240
    %v251 = vpop.permute.xlu0 %250
    %254 = vset.pattern.permute.xlu0 0
    %255 = vperm.xlu0 %254, %v241
    %v256 = vpop.permute.xlu0 %255
    %259 = vset.pattern.permute.xlu0 0
    %260 = vperm.xlu0 %259, %v242
    %v261 = vpop.permute.xlu0 %260
    %vm263 = vcmask 261120
    %v265 = vsel %vm263, %v235, 0
    %v268 = vsel %vm263, %v236, 0
    %v271 = vsel %vm263, %v237, 0
    %v274 = vsel %vm263, %v238, 0
    %276 = vmatprep.subr.mxu0 0.0
    %277 = vmatpush1.msra.mxu0 0.0
    %278 = vmatprep.subr.mxu0 0.0
    %279 = vmatpush1.msra.mxu0 0.0
    %280 = vmatprep.subr.mxu0 0.0
    %281 = vmatpush1.msra.mxu0 0.0
    %282 = vmatprep.subr.mxu0 0.0
    %283 = vmatpush1.msra.mxu0 0.0
    %284 = vmatprep.subr.mxu0 0.0
    %285 = vmatpush1.msra.mxu0 0.0
    %286 = vmatprep.subr.mxu0 0.0
    %287 = vmatpush1.msra.mxu0 0.0
    %288 = vmatprep.subr.mxu0 0.0
    %289 = vmatpush1.msra.mxu0 0.0
    %290 = vmatprep.subr.mxu0 0.0
    %291 = vmatpush1.msra.mxu0 0.0
    %292 = vmatprep.subr.mxu0 0.0
    %293 = vmatpush1.msra.mxu0 0.0
    %294 = vmatprep.subr.mxu0 0.0
    %295 = vmatpush1.msra.mxu0 0.0
    %296 = vmatprep.subr.mxu0 0.0
    %297 = vmatpush1.msra.mxu0 0.0
    %298 = vmatprep.subr.mxu0 0.0
    %299 = vmatpush1.msra.mxu0 0.0
    %300 = vmatprep.subr.mxu0 0.0
    %301 = vmatpush1.msra.mxu0 %v234
    %302 = vmatprep.subr.mxu0 0.0
    %303 = vmatpush1.msra.mxu0 %v233
    %304 = vmatprep.subr.mxu0 0.0
    %305 = vmatpush1.msra.mxu0 %v232
    %306 = vmatprep.subr.mxu0 0.0
    %307 = vmatpush1.msra.mxu0 %v231
    %308 = vmatprep.subr.mxu0 0.0
    %309 = vmatpush2.msra.mxu0 0.0
    %310 = vmatprep.subr.mxu0 0.0
    %311 = vmatpush2.msra.mxu0 0.0
    %312 = vmatprep.subr.mxu0 0.0
    %313 = vmatpush2.msra.mxu0 0.0
    %314 = vmatprep.subr.mxu0 0.0
    %315 = vmatpush2.msra.mxu0 0.0
    %316 = vmatprep.subr.mxu0 0.0
    %317 = vmatpush2.msra.mxu0 0.0
    %318 = vmatprep.subr.mxu0 0.0
    %319 = vmatpush2.msra.mxu0 0.0
    %320 = vmatprep.subr.mxu0 0.0
    %321 = vmatpush2.msra.mxu0 0.0
    %322 = vmatprep.subr.mxu0 0.0
    %323 = vmatpush2.msra.mxu0 0.0
    %324 = vmatprep.subr.mxu0 0.0
    %325 = vmatpush2.msra.mxu0 0.0
    %326 = vmatprep.subr.mxu0 0.0
    %327 = vmatpush2.msra.mxu0 0.0
    %328 = vmatprep.subr.mxu0 0.0
    %329 = vmatpush2.msra.mxu0 0.0
    %330 = vmatprep.subr.mxu0 0.0
    %331 = vmatpush2.msra.mxu0 0.0
    %332 = vmatprep.subr.mxu0 0.0
    %333 = vmatpush2.msra.mxu0 0.0
    %334 = vmatprep.subr.mxu0 0.0
    %335 = vmatpush2.msra.mxu0 0.0
    %336 = vmatprep.subr.mxu0 0.0
    %337 = vmatpush2.msra.mxu0 0.0
    %338 = vmatprep.subr.mxu0 0.0
    %339 = vmatpush2.msra.mxu0 0.0
    %340 = vmatprep.mubr.f32.mxu0 0.0
    %341 = vmatmul.mubr.f32.gmra.mxu0 %v265
    %v342 = vpop.f32.mrf.mxu0
    %v343 = vadd.f32 %v246, %v342
    %v344 = vpop.f32.mrf.mxu0
    %345 = vmatprep.mubr.f32.mxu0 0.0
    %346 = vmatmul.mubr.f32.gmra.mxu0 %v268
    %v347 = vpop.f32.mrf.mxu0
    %v348 = vadd.f32 %v251, %v347
    %v349 = vpop.f32.mrf.mxu0
    %350 = vmatprep.mubr.f32.mxu0 0.0
    %351 = vmatmul.mubr.f32.gmra.mxu0 %v271
    %v352 = vpop.f32.mrf.mxu0
    %v353 = vadd.f32 %v256, %v352
    %v354 = vpop.f32.mrf.mxu0
    %355 = vmatprep.mubr.f32.mxu0 0.0
    %356 = vmatmul.mubr.f32.gmra.mxu0 %v274
    %v357 = vpop.f32.mrf.mxu0
    %v358 = vadd.f32 %v261, %v357
    %v359 = vpop.f32.mrf.mxu0
    %360 = vdwg.mxu0
    %v361 = vmax.f32 %v343, 0.0
    %v362 = vmax.f32 %v348, 0.0
    %v363 = vmax.f32 %v353, 0.0
    %v364 = vmax.f32 %v358, 0.0
    %v365 = vld [vmem:[%s5] sm:$0x7]
    %v366 = vld [vmem:[%s6] sm:$0x7]
    %368 = vset.pattern.permute.xlu0 0
    %369 = vperm.xlu0 %368, %v366
    %v370 = vpop.permute.xlu0 %369
    %v373 = vsel %vm263, %v365, 0
    %375 = vmatprep.subr.mxu0 0.0
    %376 = vmatpush1.msra.mxu0 0.0
    %377 = vmatprep.subr.mxu0 0.0
    %378 = vmatpush1.msra.mxu0 0.0
    %379 = vmatprep.subr.mxu0 0.0
    %380 = vmatpush1.msra.mxu0 0.0
    %381 = vmatprep.subr.mxu0 0.0
    %382 = vmatpush1.msra.mxu0 0.0
    %383 = vmatprep.subr.mxu0 0.0
    %384 = vmatpush1.msra.mxu0 0.0
    %385 = vmatprep.subr.mxu0 0.0
    %386 = vmatpush1.msra.mxu0 0.0
    %387 = vmatprep.subr.mxu0 0.0
    %388 = vmatpush1.msra.mxu0 0.0
    %389 = vmatprep.subr.mxu0 0.0
    %390 = vmatpush1.msra.mxu0 0.0
    %391 = vmatprep.subr.mxu0 0.0
    %392 = vmatpush1.msra.mxu0 0.0
    %393 = vmatprep.subr.mxu0 0.0
    %394 = vmatpush1.msra.mxu0 0.0
    %395 = vmatprep.subr.mxu0 0.0
    %396 = vmatpush1.msra.mxu0 0.0
    %397 = vmatprep.subr.mxu0 0.0
    %398 = vmatpush1.msra.mxu0 0.0
    %399 = vmatprep.subr.mxu0 0.0
    %400 = vmatpush1.msra.mxu0 %v364
    %401 = vmatprep.subr.mxu0 0.0
    %402 = vmatpush1.msra.mxu0 %v363
    %403 = vmatprep.subr.mxu0 0.0
    %404 = vmatpush1.msra.mxu0 %v362
    %405 = vmatprep.subr.mxu0 0.0
    %406 = vmatpush1.msra.mxu0 %v361
    %407 = vmatprep.subr.mxu0 0.0
    %408 = vmatpush2.msra.mxu0 0.0
    %409 = vmatprep.subr.mxu0 0.0
    %410 = vmatpush2.msra.mxu0 0.0
    %411 = vmatprep.subr.mxu0 0.0
    %412 = vmatpush2.msra.mxu0 0.0
    %413 = vmatprep.subr.mxu0 0.0
    %414 = vmatpush2.msra.mxu0 0.0
    %415 = vmatprep.subr.mxu0 0.0
    %416 = vmatpush2.msra.mxu0 0.0
    %417 = vmatprep.subr.mxu0 0.0
    %418 = vmatpush2.msra.mxu0 0.0
    %419 = vmatprep.subr.mxu0 0.0
    %420 = vmatpush2.msra.mxu0 0.0
    %421 = vmatprep.subr.mxu0 0.0
    %422 = vmatpush2.msra.mxu0 0.0
    %423 = vmatprep.subr.mxu0 0.0
    %424 = vmatpush2.msra.mxu0 0.0
    %425 = vmatprep.subr.mxu0 0.0
    %426 = vmatpush2.msra.mxu0 0.0
    %427 = vmatprep.subr.mxu0 0.0
    %428 = vmatpush2.msra.mxu0 0.0
    %429 = vmatprep.subr.mxu0 0.0
    %430 = vmatpush2.msra.mxu0 0.0
    %431 = vmatprep.subr.mxu0 0.0
    %432 = vmatpush2.msra.mxu0 0.0
    %433 = vmatprep.subr.mxu0 0.0
    %434 = vmatpush2.msra.mxu0 0.0
    %435 = vmatprep.subr.mxu0 0.0
    %436 = vmatpush2.msra.mxu0 0.0
    %437 = vmatprep.subr.mxu0 0.0
    %438 = vmatpush2.msra.mxu0 0.0
    %439 = vmatprep.mubr.f32.mxu0 0.0
    %440 = vmatmul.mubr.f32.gmra.mxu0 %v373
    %v441 = vpop.f32.mrf.mxu0
    %v442 = vadd.f32 %v370, %v441
    %v443 = vpop.f32.mrf.mxu0
    %444 = vdwg.mxu0
    %445 = vst [vmem:[#allocation5] sm:$0x7] %v442
    // Predicated region
    $region34: #{tpu_custom_call.1} parent=1 // pred_check
      _
    $region35: #{tpu_custom_call.1} parent=1 // pred_check_branch
      %447 = sbr.rel (0) target = $region37
    $region36: #{tpu_custom_call.1} parent=1 // pred_region
      %s449 = ssub.s32 64, 64
      %450 = vsyncadd [#allocation4], %s449
      %s452 = sshll.u32 [#allocation5], 4
      %s453 = int_to_ptr.vmem [resolvable:$true] %s452
      %455 = dma.vmem_to_hbm [thread:$0]  %s453, 64, %s7, [#allocation4]
    $region37: #{tpu_custom_call.1} parent=1 // pred_fallthru
      _
    // Predicated region
    $region38: #{tpu_custom_call.1} parent=1 // pred_check
      _
    $region39: #{tpu_custom_call.1} parent=1 // pred_check_branch
      %457 = sbr.rel (0) target = $region41
    $region40: #{tpu_custom_call.1} parent=1 // pred_region
      %458 = dma.done [#allocation4], 64
    $region41: #{tpu_custom_call.1} parent=1 // pred_fallthru
      _
    %459 = vsyncpa [#allocation3], 1
    %460 = vsyncpa [#allocation4], 1

</llo_original>
